<compile_context>
chip_gen: v7x
topology: tpu7x:2x2x1
jax: 0.10.0
libtpu: 0.0.40
codegen_flags: <defaults>
</compile_context>

<pallas_src>
import functools

import jax
import jax.numpy as jnp
from jax.experimental import pallas as pl
from jax.experimental.pallas import tpu as pltpu


def _round_up(x, m):
    return ((x + m - 1) // m) * m


def _cdiv(a, b):
    return (a + b - 1) // b


def _sublane_multiple(dtype):
    # Native sublane tiling: 8 rows for 32-bit, 16 for 16-bit, 32 for 8-bit.
    return max(8, 32 // jnp.dtype(dtype).itemsize)


def _hinge_loss_kernel(f_ref, y_ref, acc_ref, *,
                       margin, squared, c_pos, c_neg, binary_labels,
                       row_bound, col_bound, mask_rows, mask_cols, slab):
    """Grid = (batch tiles [parallel], label tiles [arbitrary reduction]).

    Each grid step folds its (bt, ot) loss tile into a lane-dense (8, 128)
    float32 partial that lives in a VMEM-resident output block across the
    reduction axis.  Compute is fused slab-wise so intermediates stay small.
    """
    i = pl.program_id(0)
    j = pl.program_id(1)

    @pl.when(j == 0)
    def _():
        acc_ref[...] = jnp.zeros_like(acc_ref)

    bt, ot = f_ref.shape            # static block shape
    n_slabs = bt // slab

    def slab_partial(a, apply_mask):
        r0 = a * slab
        f = f_ref[r0:r0 + slab, :].astype(jnp.float32)
        y = y_ref[r0:r0 + slab, :].astype(jnp.float32)
        if binary_labels:
            # y guaranteed {0,1}: replace (2y-1)*f with a select and fold the
            # class weight into a second select (shorter VALU chain on v7x).
            pos = y > jnp.float32(0.5)
            tmp = jnp.where(pos, f, -f)
            loss = jnp.maximum(jnp.float32(margin) - tmp, 0.0)
            if squared:
                loss = loss * loss
            if c_pos != c_neg:
                loss = loss * jnp.where(pos, jnp.float32(c_pos),
                                        jnp.float32(c_neg))
        else:
            # Soft-label-safe general path.
            tmp = (2.0 * y - 1.0) * f
            loss = jnp.maximum(jnp.float32(margin) - tmp, 0.0)
            if squared:
                loss = loss * loss
            if c_pos != c_neg:
                # C_pos*y + C_neg*(1-y)  ==  C_neg + (C_pos - C_neg)*y
                loss = loss * (jnp.float32(c_neg) +
                               jnp.float32(c_pos - c_neg) * y)
        # (c_pos == c_neg: uniform weight is applied as a scalar post-scale.)

        if apply_mask:
            # Discard garbage from partial trailing blocks.  Must be a select
            # (not a multiply) so NaN/Inf garbage is dropped.
            valid = None
            if mask_rows:
                rows = (i * bt + r0 +
                        jax.lax.broadcasted_iota(jnp.int32, (slab, ot), 0))
                valid = rows < row_bound
            if mask_cols:
                cols = j * ot + jax.lax.broadcasted_iota(
                    jnp.int32, (slab, ot), 1)
                col_ok = cols < col_bound
                valid = col_ok if valid is None else (valid & col_ok)
            loss = jnp.where(valid, loss, 0.0)

        # Sublane fold: slab rows -> 8 rows (vreg-aligned static slices,
        # pure VPU adds; no XLU reduction in the hot loop).
        s = loss[0:8, :]
        for r in range(1, slab // 8):
            s = s + loss[r * 8:(r + 1) * 8, :]
        return s

    def tile_partial(apply_mask):
        part = slab_partial(0, apply_mask)
        for a in range(1, n_slabs):
            part = part + slab_partial(a, apply_mask)
        # Lane fold: ot columns -> 128.
        p = part[:, 0:128]
        for b in range(1, ot // 128):
            p = p + part[:, b * 128:(b + 1) * 128]
        return p

    if mask_rows or mask_cols:
        conds = []
        if mask_rows:
            conds.append(i == pl.num_programs(0) - 1)
        if mask_cols:
            conds.append(j == pl.num_programs(1) - 1)
        boundary = conds[0]
        for c in conds[1:]:
            boundary = jnp.logical_or(boundary, c)

        @pl.when(jnp.logical_not(boundary))
        def _():
            acc_ref[...] += tile_partial(False)

        @pl.when(boundary)
        def _():
            acc_ref[...] += tile_partial(True)
    else:
        acc_ref[...] += tile_partial(False)


def hinge_loss(f, y, C_pos=1.0, C_neg=1.0, *, margin=1.0, squared=True,
               binary_labels=None, batch_tile=512, lane_tile=1024,
               interpret=False):
    """Pallas implementation of HingeLoss.forward -> scalar mean loss.

    margin / squared / C_pos / C_neg must be Python (compile-time) values.
    binary_labels: if None, inferred from y's dtype (bool / integer -> True);
    only set True when y is strictly {0, 1}.
    """
    assert f.ndim == 2 and f.shape == y.shape, (f.shape, y.shape)
    B, O = f.shape
    C_pos = float(C_pos)
    C_neg = float(C_neg)
    margin = float(margin)
    squared = bool(squared)

    if binary_labels is None:
        binary_labels = (y.dtype == jnp.bool_) or jnp.issubdtype(
            y.dtype, jnp.integer)
    if y.dtype == jnp.bool_:
        y = y.astype(jnp.int8)   # stream 1 byte/elem; no f32 upcast copy

    f_item = jnp.dtype(f.dtype).itemsize
    y_item = jnp.dtype(y.dtype).itemsize
    sub_mult = max(_sublane_multiple(f.dtype), _sublane_multiple(y.dtype))

    # Tile sizes: lane tile multiple of 128 (dense vld/vst); batch tile a
    # multiple of the narrowest dtype's sublane group.  Defaults (512, 1024)
    # give a 2 MiB f32 block: 2 inputs x 2 pipeline buffers < scoped VMEM
    # defaults on every generation.
    ot = min(_round_up(O, 128), _round_up(lane_tile, 128))
    bt_cap = max(sub_mult, (batch_tile // sub_mult) * sub_mult)
    bt = min(_round_up(B, sub_mult), bt_cap)
    n_i = _cdiv(B, bt)
    if n_i == 1 and B > sub_mult:
        # v7x megacore: make sure the "parallel" axis has extent >= 2.
        bt = max(sub_mult, _round_up(_cdiv(B, 2), sub_mult))
        n_i = _cdiv(B, bt)
    n_j = _cdiv(O, ot)
    mask_rows = (B % bt) != 0
    mask_cols = (O % ot) != 0

    slab = next(s for s in (32, 16, 8) if bt % s == 0)

    kernel = functools.partial(
        _hinge_loss_kernel,
        margin=margin, squared=squared, c_pos=C_pos, c_neg=C_neg,
        binary_labels=bool(binary_labels),
        row_bound=B, col_bound=O,
        mask_rows=mask_rows, mask_cols=mask_cols, slab=slab)

    flops_per_elem = 6 + (1 if squared else 0) + (2 if C_pos != C_neg else 0)
    cost = pl.CostEstimate(
        flops=flops_per_elem * B * O,
        transcendentals=0,
        bytes_accessed=B * O * (f_item + y_item) + n_i * 8 * 128 * 4)

    partials = pl.pallas_call(
        kernel,
        out_shape=jax.ShapeDtypeStruct((n_i * 8, 128), jnp.float32),
        grid=(n_i, n_j),
        in_specs=[
            pl.BlockSpec((bt, ot), lambda i, j: (i, j)),   # f tile
            pl.BlockSpec((bt, ot), lambda i, j: (i, j)),   # y tile
        ],
        # Lane-dense (8, 128) partial per batch tile; VMEM-resident across
        # the "arbitrary" reduction axis j, written back once per i.
        out_specs=pl.BlockSpec((8, 128), lambda i, j: (i, 0)),
        compiler_params=pltpu.CompilerParams(
            dimension_semantics=("parallel", "arbitrary")),
        cost_estimate=cost,
        interpret=interpret,
    )(f, y)

    total = jnp.sum(partials, dtype=jnp.float32)
    if C_pos == C_neg and C_pos != 1.0:
        total = total * jnp.float32(C_pos)
    return total / jnp.float32(B * O)


def _reference_hinge_loss(f, y, C_pos=1.0, C_neg=1.0, margin=1.0, squared=True):
    f = f.astype(jnp.float32)
    y = y.astype(jnp.float32)
    y_new = 2.0 * y - 1.0
    loss = jnp.maximum(margin - y_new * f, 0.0)
    if squared:
        loss = loss ** 2
    loss = loss * (C_pos * y + C_neg * (1.0 - y))
    return loss.mean()


if __name__ == "__main__":
    k1, k2, k3, k4, k5, k6 = jax.random.split(jax.random.PRNGKey(0), 6)

    # 1) Small aligned case, soft-label (float) path, uniform unit weights.
    B, O = 16, 256
    f1 = jax.random.normal(k1, (B, O), dtype=jnp.float32)
    y1 = (jax.random.uniform(k2, (B, O)) > 0.5).astype(jnp.float32)
    out1 = jax.block_until_ready(hinge_loss(f1, y1))
    ref1 = _reference_hinge_loss(f1, y1)
    assert jnp.allclose(out1, ref1, rtol=1e-5, atol=1e-6), (out1, ref1)

    # 2) Ragged shape, narrow int8 labels (binary select path, no pad copy),
    #    non-uniform class weights, non-squared hinge, multi-tile reduction.
    f2 = jax.random.normal(k3, (20, 300), dtype=jnp.float32)
    y2 = (jax.random.uniform(k4, (20, 300)) > 0.5).astype(jnp.int8)
    out2 = jax.block_until_ready(
        hinge_loss(f2, y2, C_pos=2.0, C_neg=0.5, margin=0.7, squared=False,
                   lane_tile=128))
    ref2 = _reference_hinge_loss(f2, y2, C_pos=2.0, C_neg=0.5, margin=0.7,
                                 squared=False)
    assert jnp.allclose(out2, ref2, rtol=1e-5, atol=1e-6), (out2, ref2)

    # 3) Ragged in both dims with interior + boundary tiles (pl.when gating),
    #    uniform non-unit weight applied as a scalar post-scale.
    f3 = jax.random.normal(k5, (72, 520), dtype=jnp.float32)
    y3 = (jax.random.uniform(k6, (72, 520)) > 0.5).astype(jnp.float32)
    out3 = jax.block_until_ready(
        hinge_loss(f3, y3, C_pos=3.0, C_neg=3.0, margin=1.3, squared=True,
                   batch_tile=32, lane_tile=256))
    ref3 = _reference_hinge_loss(f3, y3, C_pos=3.0, C_neg=3.0, margin=1.3,
                                 squared=True)
    assert jnp.allclose(out3, ref3, rtol=1e-5, atol=1e-6), (out3, ref3)

    print("KERNEL_OK")
</pallas_src>

<mosaic_0001>
module attributes {stable_mosaic.version = 11 : i64} {
  func.func @_hinge_loss_kernel(%arg0: i32, %arg1: i32, %arg2: memref<8x256xf32, #tpu.memory_space<vmem>>, %arg3: memref<8x256xf32, #tpu.memory_space<vmem>>, %arg4: memref<8x128xf32, #tpu.memory_space<vmem>>) attributes {dimension_semantics = [#tpu.dimension_semantics<parallel>, #tpu.dimension_semantics<arbitrary>], iteration_bounds = array<i64: 2, 1>, scalar_prefetch = 0 : i64, scratch_operands = 0 : i64, tpu.core_type = #tpu.core_type<tc>, window_params = [{transform_indices = @transform_0, window_bounds = array<i64: 8, 256>}, {transform_indices = @transform_1, window_bounds = array<i64: 8, 256>}, {transform_indices = @transform_2, window_bounds = array<i64: 8, 128>}]} {
    %c0_i32 = arith.constant 0 : i32
    %0 = arith.cmpi eq, %arg1, %c0_i32 : i32
    %1 = arith.extui %0 : i1 to i32
    %c0_i32_0 = arith.constant 0 : i32
    %2 = arith.cmpi ne, %1, %c0_i32_0 : i32
    scf.if %2 {
      %cst_11 = arith.constant 0.000000e+00 : f32
      %21 = vector.broadcast %cst_11 : f32 to vector<8x128xf32>
      %c0_12 = arith.constant 0 : index
      %c0_13 = arith.constant 0 : index
      %22 = vector.load %arg4[%c0_12, %c0_13] : memref<8x128xf32, #tpu.memory_space<vmem>>, vector<8x128xf32>
      tpu.vector_store %arg4[%c0_12, %c0_13], %21 {strides = array<i32>} : memref<8x128xf32, #tpu.memory_space<vmem>>, vector<8x128xf32>,
    } else {
    }
    %c0 = arith.constant 0 : index
    %c0_1 = arith.constant 0 : index
    %3 = vector.load %arg4[%c0, %c0_1] : memref<8x128xf32, #tpu.memory_space<vmem>>, vector<8x128xf32>
    %c0_2 = arith.constant 0 : index
    %c0_3 = arith.constant 0 : index
    %4 = vector.load %arg2[%c0_2, %c0_3] : memref<8x256xf32, #tpu.memory_space<vmem>>, vector<8x256xf32>
    %c0_4 = arith.constant 0 : index
    %c0_5 = arith.constant 0 : index
    %5 = vector.load %arg3[%c0_4, %c0_5] : memref<8x256xf32, #tpu.memory_space<vmem>>, vector<8x256xf32>
    %cst = arith.constant 2.000000e+00 : f32
    %6 = vector.broadcast %cst : f32 to vector<8x256xf32>
    %7 = arith.mulf %6, %5 : vector<8x256xf32>
    %cst_6 = arith.constant 1.000000e+00 : f32
    %8 = vector.broadcast %cst_6 : f32 to vector<8x256xf32>
    %9 = arith.subf %7, %8 : vector<8x256xf32>
    %10 = arith.mulf %9, %4 : vector<8x256xf32>
    %cst_7 = arith.constant 1.000000e+00 : f32
    %11 = vector.broadcast %cst_7 : f32 to vector<8x256xf32>
    %12 = arith.subf %11, %10 : vector<8x256xf32>
    %cst_8 = arith.constant 0.000000e+00 : f32
    %13 = vector.broadcast %cst_8 : f32 to vector<8x256xf32>
    %14 = arith.maximumf %12, %13 : vector<8x256xf32>
    %15 = arith.mulf %14, %14 : vector<8x256xf32>
    %16 = vector.extract_strided_slice %15 {offsets = [0, 0], sizes = [8, 128], strides = [1, 1]} : vector<8x256xf32> to vector<8x128xf32>
    %17 = vector.extract_strided_slice %15 {offsets = [0, 128], sizes = [8, 128], strides = [1, 1]} : vector<8x256xf32> to vector<8x128xf32>
    %18 = arith.addf %16, %17 : vector<8x128xf32>
    %19 = arith.addf %3, %18 : vector<8x128xf32>
    %c0_9 = arith.constant 0 : index
    %c0_10 = arith.constant 0 : index
    %20 = vector.load %arg4[%c0_9, %c0_10] : memref<8x128xf32, #tpu.memory_space<vmem>>, vector<8x128xf32>
    tpu.vector_store %arg4[%c0_9, %c0_10], %19 {strides = array<i32>} : memref<8x128xf32, #tpu.memory_space<vmem>>, vector<8x128xf32>,
    return
  }
  func.func @transform_0(%arg0: i32, %arg1: i32) -> (i32, i32) {
    %c0_i32 = arith.constant 0 : i32
    return %arg0, %arg1 : i32, i32
  }
  func.func @transform_1(%arg0: i32, %arg1: i32) -> (i32, i32) {
    %c0_i32 = arith.constant 0 : i32
    return %arg0, %arg1 : i32, i32
  }
  func.func @transform_2(%arg0: i32, %arg1: i32) -> (i32, i32) {
    %c0_i32 = arith.constant 0 : i32
    %c0_i32_0 = arith.constant 0 : i32
    return %arg0, %c0_i32 : i32, i32
  }
}

</mosaic_0001>

<llo_original>
// kernel: tpu_custom_call.1
$region0: #{tpu_custom_call.1}
  #allocation0 [shape = 'u32[]', space=smem, size = 0x4, offset = 0x4, fixed_abs, tag = 'smem constant byte address 0x4 - core index']
  #allocation1 [shape = 'u32[144,128]{1,0:T(1,128)}', space=vmem, size = 0x12000, scoped, tag = 'internal scratch']
  %s0 = inlined_call_operand.hbm [shape: f32[16,256], index: 0, kind: input, shape index: {}]
  %s1 = inlined_call_operand.hbm [shape: f32[16,256], index: 1, kind: input, shape index: {}]
  %s2 = inlined_call_operand.hbm [shape: f32[16,128], index: 2, kind: output, shape index: {}]
  %s3 = sld [smem:[#allocation0]]
  $region53: #{tpu_custom_call.1} parent=0
    _
  %s5 = ssub.s32 1, %s3
  %s6 = scalar_select 0, %s5, %s3
  $region1: #{tpu_custom_call.1} parent=0
    #allocation2 [shape = 'u8[16384]{0}', space=vmem, size = 0x4000, scoped, tag = 'input window, operand 0']
    #allocation3 [shape = 's32[2]{0}', space=sflag, size = 0x8, scoped, tag = 'scoped memory for tpu_custom_call.1']
    #allocation4 [shape = 's32[2]{0}', space=sflag, size = 0x8, scoped, tag = 'scoped memory for tpu_custom_call.1']
    #allocation5 [shape = 'u8[16384]{0}', space=vmem, size = 0x4000, scoped, tag = 'input window, operand 1']
    #allocation6 [shape = 's32[2]{0}', space=sflag, size = 0x8, scoped, tag = 'scoped memory for tpu_custom_call.1']
    #allocation7 [shape = 'u8[8192]{0}', space=vmem, size = 0x2000, scoped, tag = 'output window, operand 0']
    %7 = vsyncpa [#allocation3], 0
    %s8 = scalar_lea.sflag [#allocation3], 1
    %9 = vsyncpa %s8, 0
    %10 = vsyncpa [#allocation6], 0
    %s11 = scalar_lea.sflag [#allocation6], 1
    %12 = vsyncpa %s11, 0
    %13 = vsyncpa [#allocation4], 0
    %s14 = scalar_lea.sflag [#allocation4], 1
    %15 = vsyncpa %s14, 0
    loop: start=0, step=1, limit=4
    $region2: #{tpu_custom_call.1} parent=1 // loop_pre_header
      _
    $region3: #{tpu_custom_call.1} parent=1 // loop_header
      %s17 = sphi 0, %s21
      %p18 = scmp.ge.s32.totalorder %s17, 4
      %s24 = sphi 0, %s36
      %s25 = sphi 0, %s32
      %s26 = sphi 0, %s24
      %s27 = sphi 0, %s25
      %s28 = sphi 0, %s26
      %s29 = sphi 0, %s27
      %s41 = sphi 0, %s43
      %s44 = sphi 0, %s41
      %s45 = sphi 0, %s44
      %s61 = sphi 0, %s45
      %s69 = sphi 0, %s71
      %s72 = sphi 0, %s69
      %s73 = sphi 0, %s72
      %s89 = sphi 0, %s73
      %s95 = sphi 0, %s97
      %s98 = sphi 0, %s95
      %s99 = sphi 0, %s98
      %s115 = sphi 0, %s99
    $region4: #{tpu_custom_call.1} parent=1 // loop_header_branch
      %20 = sbr.rel (%p18) target = $region8
    $region5: #{tpu_custom_call.1} parent=1 // loop_body
      %s22 = ssub.s32 %s17, 1
      %s23 = ssub.s32 %s17, 2
      %s30 = sadd.s32 1, %s25
      %p31 = scmp.ge.s32.totalorder %s30, 1
      %s32 = scalar_select %p31, 0, %s30
      %s33 = sadd.s32 1, %s24
      %s34 = scalar_select %p31, %s33, %s24
      %p35 = scmp.ge.s32.totalorder %s34, 2
      %s36 = scalar_select %p35, 0, %s34
      %s37 = ssub.s32 %s24, %s36
      %s38 = ssub.s32 %s25, %s32
      %s39 = sor.u32 %s37, %s38
      %p40 = scmp.eq.s32.totalorder %s39, 0
      %s42 = sadd.s32 %s41, 1
      %s43 = scalar_select %p40, %s41, %s42
      %p46 = pneg %p40
      %p47 = scmp.eq.s32.totalorder %s17, 1
      %p48 = por %p46, %p47
      %p49 = scmp.ne.s32.totalorder %s41, %s44
      %p50 = scmp.eq.s32.totalorder %s17, 0
      %p51 = por %p49, %p50
      %p52 = scmp.ne.s32.totalorder %s41, %s44
      %p53 = scmp.eq.s32.totalorder %s22, 1
      %p54 = por %p52, %p53
      %p55 = scmp.ne.s32.totalorder %s44, %s45
      %p56 = scmp.eq.s32.totalorder %s22, 0
      %p57 = por %p55, %p56
      %p58 = scmp.ne.s32.totalorder %s44, %s45
      %p59 = scmp.eq.s32.totalorder %s23, 1
      %p60 = por %p58, %p59
      %p62 = scmp.ne.s32.totalorder %s45, %s61
      %p63 = scmp.eq.s32.totalorder %s23, 0
      %p64 = por %p62, %p63
      %s65 = ssub.s32 %s24, %s36
      %s66 = ssub.s32 %s25, %s32
      %s67 = sor.u32 %s65, %s66
      %p68 = scmp.eq.s32.totalorder %s67, 0
      %s70 = sadd.s32 %s69, 1
      %s71 = scalar_select %p68, %s69, %s70
      %p74 = pneg %p68
      %p75 = scmp.eq.s32.totalorder %s17, 1
      %p76 = por %p74, %p75
      %p77 = scmp.ne.s32.totalorder %s69, %s72
      %p78 = scmp.eq.s32.totalorder %s17, 0
      %p79 = por %p77, %p78
      %p80 = scmp.ne.s32.totalorder %s69, %s72
      %p81 = scmp.eq.s32.totalorder %s22, 1
      %p82 = por %p80, %p81
      %p83 = scmp.ne.s32.totalorder %s72, %s73
      %p84 = scmp.eq.s32.totalorder %s22, 0
      %p85 = por %p83, %p84
      %p86 = scmp.ne.s32.totalorder %s72, %s73
      %p87 = scmp.eq.s32.totalorder %s23, 1
      %p88 = por %p86, %p87
      %p90 = scmp.ne.s32.totalorder %s73, %s89
      %p91 = scmp.eq.s32.totalorder %s23, 0
      %p92 = por %p90, %p91
      %s93 = ssub.s32 %s24, %s36
      %p94 = scmp.eq.s32.totalorder %s93, 0
      %s96 = sadd.s32 %s95, 1
      %s97 = scalar_select %p94, %s95, %s96
      %p100 = pneg %p94
      %p101 = scmp.eq.s32.totalorder %s17, 1
      %p102 = por %p100, %p101
      %p103 = scmp.ne.s32.totalorder %s95, %s98
      %p104 = scmp.eq.s32.totalorder %s17, 0
      %p105 = por %p103, %p104
      %p106 = scmp.ne.s32.totalorder %s95, %s98
      %p107 = scmp.eq.s32.totalorder %s22, 1
      %p108 = por %p106, %p107
      %p109 = scmp.ne.s32.totalorder %s98, %s99
      %p110 = scmp.eq.s32.totalorder %s22, 0
      %p111 = por %p109, %p110
      %p112 = scmp.ne.s32.totalorder %s98, %s99
      %p113 = scmp.eq.s32.totalorder %s23, 1
      %p114 = por %p112, %p113
      %p116 = scmp.ne.s32.totalorder %s99, %s115
      %p117 = scmp.eq.s32.totalorder %s23, 0
      %p118 = por %p116, %p117
      %p119 = scmp.le.s32.totalorder 1, %s17
      %p120 = scmp.lt.s32.totalorder %s17, 3
      %p121 = pnand %p119, %p120
      %p122 = pneg %p121
      // Predicated region
      $region9: #{tpu_custom_call.1} parent=5 // pred_check
        _
      $region10: #{tpu_custom_call.1} parent=5 // pred_check_branch
        %124 = sbr.rel (%p121) target = $region12
      $region11: #{tpu_custom_call.1} parent=5 // pred_region
        %s125 = ssub.s32 %s17, 1
      $region12: #{tpu_custom_call.1} parent=5 // pred_fallthru
        _
      %p126 = scmp.lt.s32.totalorder %s17, 2
      // Predicated region
      $region13: #{tpu_custom_call.1} parent=5 // pred_check
        %p127 = pneg %p126
      $region14: #{tpu_custom_call.1} parent=5 // pred_check_branch
        %129 = sbr.rel (%p127) target = $region16
      $region15: #{tpu_custom_call.1} parent=5 // pred_region
        // Predicated region
        $region17: #{tpu_custom_call.1} parent=15 // pred_check
          %p130 = pneg %p51
        $region18: #{tpu_custom_call.1} parent=15 // pred_check_branch
          %132 = sbr.rel (%p130) target = $region20
        $region19: #{tpu_custom_call.1} parent=15 // pred_region
          %s133 = sand.u32 %s41, 1
          %s134 = scalar_lea.sflag [#allocation3], %s133
          %s135 = sand.u32 %s41, 1
          %s136 = smul.addr %s135, 16
          %s137 = scalar_lea.vmem [#allocation2], %s136
          %s138 = smul.u32 2, %s25
          %s140 = ssub.s32 256, 256
          %141 = vsyncadd %s134, %s140
          %s142 = smul.addr %s24, 2
          %s143 = sadd.s32 %s138, %s142
          %s144 = smul.addr %s143, 128
          %s145 = scalar_lea.hbm %s0, %s144
          %s147 = sshll.u32 %s137, 4
          %s148 = int_to_ptr.vmem [resolvable:$true] %s147
          %150 = dma.hbm_to_vmem [thread:$0]  %s145, 256, %s148, %s134
        $region20: #{tpu_custom_call.1} parent=15 // pred_fallthru
          _
        // Predicated region
        $region21: #{tpu_custom_call.1} parent=15 // pred_check
          %p151 = pneg %p79
        $region22: #{tpu_custom_call.1} parent=15 // pred_check_branch
          %153 = sbr.rel (%p151) target = $region24
        $region23: #{tpu_custom_call.1} parent=15 // pred_region
          %s154 = sand.u32 %s69, 1
          %s155 = scalar_lea.sflag [#allocation6], %s154
          %s156 = sand.u32 %s69, 1
          %s157 = smul.addr %s156, 16
          %s158 = scalar_lea.vmem [#allocation5], %s157
          %s159 = smul.u32 2, %s25
          %s161 = ssub.s32 256, 256
          %162 = vsyncadd %s155, %s161
          %s163 = smul.addr %s24, 2
          %s164 = sadd.s32 %s159, %s163
          %s165 = smul.addr %s164, 128
          %s166 = scalar_lea.hbm %s1, %s165
          %s168 = sshll.u32 %s158, 4
          %s169 = int_to_ptr.vmem [resolvable:$true] %s168
          %171 = dma.hbm_to_vmem [thread:$0]  %s166, 256, %s169, %s155
        $region24: #{tpu_custom_call.1} parent=15 // pred_fallthru
          _
      $region16: #{tpu_custom_call.1} parent=5 // pred_fallthru
        _
      %p172 = scmp.le.s32.totalorder 1, %s17
      %p173 = scmp.lt.s32.totalorder %s17, 3
      %p174 = pnand %p172, %p173
      %p175 = pneg %p174
      // Predicated region
      $region25: #{tpu_custom_call.1} parent=5 // pred_check
        _
      $region26: #{tpu_custom_call.1} parent=5 // pred_check_branch
        %177 = sbr.rel (%p174) target = $region28
      $region27: #{tpu_custom_call.1} parent=5 // pred_region
        %s178 = ssub.s32 %s17, 1
        %s179 = sand.u32 %s44, 1
        %s180 = scalar_lea.sflag [#allocation3], %s179
        %s181 = sand.u32 %s44, 1
        %s182 = smul.addr %s181, 16
        %s183 = scalar_lea.vmem [#allocation2], %s182
        // Predicated region
        $region29: #{tpu_custom_call.1} parent=27 // pred_check
          %p184 = pneg %p57
        $region30: #{tpu_custom_call.1} parent=27 // pred_check_branch
          %186 = sbr.rel (%p184) target = $region32
        $region31: #{tpu_custom_call.1} parent=27 // pred_region
          %187 = dma.done %s180, 256
        $region32: #{tpu_custom_call.1} parent=27 // pred_fallthru
          _
        %s188 = sand.u32 %s72, 1
        %s189 = scalar_lea.sflag [#allocation6], %s188
        %s190 = sand.u32 %s72, 1
        %s191 = smul.addr %s190, 16
        %s192 = scalar_lea.vmem [#allocation5], %s191
        // Predicated region
        $region33: #{tpu_custom_call.1} parent=27 // pred_check
          %p193 = pneg %p85
        $region34: #{tpu_custom_call.1} parent=27 // pred_check_branch
          %195 = sbr.rel (%p193) target = $region36
        $region35: #{tpu_custom_call.1} parent=27 // pred_region
          %196 = dma.done %s189, 256
        $region36: #{tpu_custom_call.1} parent=27 // pred_fallthru
          _
        %s197 = sand.u32 %s44, 1
        %s198 = scalar_lea.sflag [#allocation3], %s197
        %s199 = sand.u32 %s44, 1
        %s200 = smul.addr %s199, 16
        %s201 = scalar_lea.vmem [#allocation2], %s200
        %p202 = pneg %p57
        %p203 = pneg %p54
        %s204 = sand.u32 %s72, 1
        %s205 = scalar_lea.sflag [#allocation6], %s204
        %s206 = sand.u32 %s72, 1
        %s207 = smul.addr %s206, 16
        %s208 = scalar_lea.vmem [#allocation5], %s207
        %p209 = pneg %p85
        %p210 = pneg %p82
        %p211 = pneg %p111
        %p212 = pneg %p108
        %s213 = sand.u32 %s98, 1
        %s214 = scalar_lea.sflag [#allocation4], %s213
        %s215 = sand.u32 %s98, 1
        %s216 = smul.addr %s215, 8
        %s217 = scalar_lea.vmem [#allocation7], %s216
        %s218 = smul.u32 2, %s27
        %s219 = smul.u32 2, %s27
        %p220 = scmp.eq.s32.totalorder %s27, 0
        // Predicated region
        $region37: #{tpu_custom_call.1} parent=27 // pred_check
          %p221 = pneg %p220
        $region38: #{tpu_custom_call.1} parent=27 // pred_check_branch
          %223 = sbr.rel (%p221) target = $region40
        $region39: #{tpu_custom_call.1} parent=27 // pred_region
          %224 = vst [vmem:[%s217] sm:$0xff] 0.0
        $region40: #{tpu_custom_call.1} parent=27 // pred_fallthru
          _
        %v225 = vld [vmem:[%s217] sm:$0xff]
        %v226 = vld [vmem:[%s183] sm:$0xff]
        %v227 = vld [vmem:[%s183 + $0x8] sm:$0xff]
        %v228 = vld [vmem:[%s192] sm:$0xff]
        %v229 = vld [vmem:[%s192 + $0x8] sm:$0xff]
        %v230 = vmul.f32 %v228, 2.0
        %v231 = vmul.f32 %v229, 2.0
        %v232 = vsub.f32 %v230, 1.0
        %v233 = vsub.f32 %v231, 1.0
        %v234 = vmul.f32 %v232, %v226
        %v235 = vmul.f32 %v233, %v227
        %v236 = vsub.f32 1.0, %v234
        %v237 = vsub.f32 1.0, %v235
        %v238 = vmax.f32 %v236, 0.0
        %v239 = vmax.f32 %v237, 0.0
        %v240 = vmul.f32 %v238, %v238
        %v241 = vmul.f32 %v239, %v239
        %v242 = vadd.f32 %v240, %v241
        %v243 = vadd.f32 %v225, %v242
        %244 = vst [vmem:[%s217] sm:$0xff] %v243
        %s245 = sand.u32 %s98, 1
        %s246 = scalar_lea.sflag [#allocation4], %s245
        %s247 = sand.u32 %s98, 1
        %s248 = smul.addr %s247, 8
        %s249 = scalar_lea.vmem [#allocation7], %s248
        // Predicated region
        $region41: #{tpu_custom_call.1} parent=27 // pred_check
          %p250 = pneg %p108
        $region42: #{tpu_custom_call.1} parent=27 // pred_check_branch
          %252 = sbr.rel (%p250) target = $region44
        $region43: #{tpu_custom_call.1} parent=27 // pred_region
          %s254 = ssub.s32 128, 128
          %255 = vsyncadd %s246, %s254
          %s256 = smul.addr %s26, 128
          %s257 = scalar_lea.hbm %s2, %s256
          %s259 = sshll.u32 %s249, 4
          %s260 = int_to_ptr.vmem [resolvable:$true] %s259
          %262 = dma.vmem_to_hbm [thread:$0]  %s260, 128, %s257, %s246
        $region44: #{tpu_custom_call.1} parent=27 // pred_fallthru
          _
      $region28: #{tpu_custom_call.1} parent=5 // pred_fallthru
        _
      %p263 = scmp.le.s32.totalorder 2, %s17
      // Predicated region
      $region45: #{tpu_custom_call.1} parent=5 // pred_check
        %p264 = pneg %p263
      $region46: #{tpu_custom_call.1} parent=5 // pred_check_branch
        %266 = sbr.rel (%p264) target = $region48
      $region47: #{tpu_custom_call.1} parent=5 // pred_region
        %s267 = ssub.s32 %s17, 2
        // Predicated region
        $region49: #{tpu_custom_call.1} parent=47 // pred_check
          %p268 = pneg %p114
        $region50: #{tpu_custom_call.1} parent=47 // pred_check_branch
          %270 = sbr.rel (%p268) target = $region52
        $region51: #{tpu_custom_call.1} parent=47 // pred_region
          %s271 = sand.u32 %s99, 1
          %s272 = scalar_lea.sflag [#allocation4], %s271
          %s273 = sand.u32 %s99, 1
          %s274 = smul.addr %s273, 8
          %s275 = scalar_lea.vmem [#allocation7], %s274
          %276 = dma.done %s272, 128
        $region52: #{tpu_custom_call.1} parent=47 // pred_fallthru
          _
      $region48: #{tpu_custom_call.1} parent=5 // pred_fallthru
        _
    $region6: #{tpu_custom_call.1} parent=1 // loop_footer
      %s21 = sadd.s32 1, %s17
    $region7: #{tpu_custom_call.1} parent=1 // loop_footer_branch
      %16 = sbr.rel target = $region3
    $region8: #{tpu_custom_call.1} parent=1 // loop_exit
      _
    %277 = vsyncpa [#allocation3], 1
    %s278 = scalar_lea.sflag [#allocation3], 1
    %279 = vsyncpa %s278, 1
    %280 = vsyncpa [#allocation6], 1
    %s281 = scalar_lea.sflag [#allocation6], 1
    %282 = vsyncpa %s281, 1
    %283 = vsyncpa [#allocation4], 1
    %s284 = scalar_lea.sflag [#allocation4], 1
    %285 = vsyncpa %s284, 1

</llo_original>
